<compile_context>
chip_gen: v7x
topology: tpu7x:2x2x1
jax: 0.10.0
libtpu: 0.0.40
codegen_flags: <defaults>
</compile_context>

<pallas_src>
import functools

import jax
import jax.numpy as jnp
from jax.experimental import pallas as pl
from jax.experimental.pallas import tpu as pltpu

LN_EPS = 1e-5                       # PyTorch nn.LayerNorm default
VMEM_LIMIT = 48 * 1024 * 1024       # > 16/32 MiB defaults, < v7x 64 MiB physical


def _layer_norm(x, gamma, beta):
    # f32 statistics over the hidden (lane) axis.
    mean = jnp.mean(x, axis=-1, keepdims=True)
    var = jnp.mean((x - mean) ** 2, axis=-1, keepdims=True)
    inv = jax.lax.rsqrt(var + LN_EPS)
    return (x - mean) * inv * gamma + beta


def _const_spec(shape):
    """Whole-array block, same block for every grid step (weights / tables).

    NOTE: these constant-index blocks could be single-buffered via
    pipeline_mode=pl.Buffered(1) for extra VMEM headroom; default buffering is
    kept for portability across Pallas versions.
    """
    zeros = (0,) * len(shape)
    return pl.BlockSpec(shape, lambda *_: zeros)


# ------------------- Kernel 1: embedding sum + LayerNorm ---------------------
def embed_ln_kernel(we_ref, pe_ref, se_ref, g_ref, b_ref, o_ref):
    # we: (1,S,H) f32   pe: (S,H)   se: (1,H)   g/b: (1,H)   out: (1,S,H) bf16
    x = we_ref[0] + pe_ref[...] + se_ref[...]
    y = _layer_norm(x, g_ref[...], b_ref[...])
    o_ref[...] = y.astype(o_ref.dtype)[None]


def embed_ln(word_emb, pos_emb, seg_row, gamma, beta):
    B, S, H = word_emb.shape
    return pl.pallas_call(
        embed_ln_kernel,
        out_shape=jax.ShapeDtypeStruct((B, S, H), jnp.bfloat16),
        grid_spec=pltpu.PrefetchScalarGridSpec(
            num_scalar_prefetch=0,
            grid=(B,),
            in_specs=[
                pl.BlockSpec((1, S, H), lambda b: (b, 0, 0)),
                _const_spec((S, H)),
                _const_spec((1, H)),
                _const_spec((1, H)),
                _const_spec((1, H)),
            ],
            out_specs=pl.BlockSpec((1, S, H), lambda b: (b, 0, 0)),
        ),
        compiler_params=pltpu.CompilerParams(
            dimension_semantics=("parallel",),
            vmem_limit_bytes=VMEM_LIMIT),
    )(word_emb, pos_emb, seg_row, gamma, beta)


# ---- Kernel 2: multi-head self-attention + out-proj + residual + LN1 --------
# Grid (batch,).  Per step: for each head (static Python loop) project q/k/v,
# masked softmax, weighted sum, and immediately project the (S, hd) head
# context back to (S, H) with that head's slice of Wo, accumulating in f32.
# No (B, nh, S, hd) HBM intermediate, no transpose glue, no narrow stores.
def attn_ln1_kernel(x_ref, m_ref, wq_ref, bq_ref, wk_ref, bk_ref, wv_ref,
                    bv_ref, wo_ref, bo_ref, g1_ref, b1_ref, o_ref, *,
                    num_heads):
    x_bf = x_ref[0]                                   # (S, H) bf16
    mask = m_ref[0]                                   # (1, S) additive, f32
    hd = wq_ref.shape[-1]
    scaling = float(hd) ** -0.5

    acc = None
    for h in range(num_heads):
        q = jnp.dot(x_bf, wq_ref[h], preferred_element_type=jnp.float32) + bq_ref[h]
        k = jnp.dot(x_bf, wk_ref[h], preferred_element_type=jnp.float32) + bk_ref[h]
        v = jnp.dot(x_bf, wv_ref[h], preferred_element_type=jnp.float32) + bv_ref[h]
        q = q * scaling                               # fold 1/sqrt(hd) into q

        s = jnp.einsum('qd,kd->qk', q.astype(jnp.bfloat16), k.astype(jnp.bfloat16),
                       preferred_element_type=jnp.float32)       # (S, S)
        s = s + mask                                  # broadcast over query rows
        s = s - jnp.max(s, axis=-1, keepdims=True)    # stable softmax (f32)
        p = jnp.exp(s)
        p = p * pl.reciprocal(jnp.sum(p, axis=-1, keepdims=True), approx=True)

        o_h = jnp.dot(p.astype(jnp.bfloat16), v.astype(jnp.bfloat16),
                      preferred_element_type=jnp.float32)        # (S, hd)
        contrib = jnp.dot(o_h.astype(jnp.bfloat16), wo_ref[h],
                          preferred_element_type=jnp.float32)    # (S, H)
        acc = contrib if acc is None else acc + contrib

    attn_out = acc + bo_ref[...]
    h1 = _layer_norm(x_bf.astype(jnp.float32) + attn_out, g1_ref[...], b1_ref[...])
    o_ref[...] = h1.astype(o_ref.dtype)[None]


def attention_block(x, mask, lp, num_heads):
    B, S, H = x.shape
    nh, _, hd = lp['wq'].shape
    kernel = functools.partial(attn_ln1_kernel, num_heads=num_heads)
    return pl.pallas_call(
        kernel,
        out_shape=jax.ShapeDtypeStruct((B, S, H), jnp.bfloat16),
        grid_spec=pltpu.PrefetchScalarGridSpec(
            num_scalar_prefetch=0,
            grid=(B,),
            in_specs=[
                pl.BlockSpec((1, S, H), lambda b: (b, 0, 0)),
                pl.BlockSpec((1, 1, S), lambda b: (b, 0, 0)),
                _const_spec((nh, H, hd)), _const_spec((nh, 1, hd)),
                _const_spec((nh, H, hd)), _const_spec((nh, 1, hd)),
                _const_spec((nh, H, hd)), _const_spec((nh, 1, hd)),
                _const_spec((nh, hd, H)), _const_spec((1, H)),
                _const_spec((1, H)), _const_spec((1, H)),
            ],
            out_specs=pl.BlockSpec((1, S, H), lambda b: (b, 0, 0)),
        ),
        compiler_params=pltpu.CompilerParams(
            dimension_semantics=("parallel",),
            vmem_limit_bytes=VMEM_LIMIT),
    )(x, mask, lp['wq'], lp['bq'], lp['wk'], lp['bk'], lp['wv'], lp['bv'],
      lp['wo'], lp['bo'], lp['g1'], lp['b1'])


# ------------- Kernel 3: FFN(GELU) + residual + LN2 (sequence-tiled) ---------
def ffn_ln2_kernel(h_ref, w1_ref, b1_ref, w2_ref, b2_ref, g_ref, beta_ref,
                   o_ref):
    h_bf = h_ref[0]                                   # (TS, H) bf16
    ff = jnp.dot(h_bf, w1_ref[...], preferred_element_type=jnp.float32) + b1_ref[...]
    ff = jax.nn.gelu(ff, approximate=False)           # exact erf GELU (nn.GELU default)
    ff = jnp.dot(ff.astype(jnp.bfloat16), w2_ref[...],
                 preferred_element_type=jnp.float32) + b2_ref[...]
    y = _layer_norm(h_bf.astype(jnp.float32) + ff, g_ref[...], beta_ref[...])
    o_ref[...] = y.astype(o_ref.dtype)[None]


def _seq_tile(S):
    # Biggest S tile that keeps the (TS, 4H) intermediate comfortably in VMEM
    # (re-derived for v7x's 64 MiB ceiling); falls back to full S if it does
    # not divide evenly (small / test shapes).
    for ts in (256, 128):
        if S % ts == 0:
            return ts
    return S


def ffn_block(h1, lp):
    B, S, H = h1.shape
    TS = _seq_tile(S)
    return pl.pallas_call(
        ffn_ln2_kernel,
        out_shape=jax.ShapeDtypeStruct((B, S, H), jnp.bfloat16),
        grid_spec=pltpu.PrefetchScalarGridSpec(
            num_scalar_prefetch=0,
            grid=(B, S // TS),
            in_specs=[
                pl.BlockSpec((1, TS, H), lambda b, s: (b, s, 0)),
                _const_spec((H, 4 * H)), _const_spec((1, 4 * H)),
                _const_spec((4 * H, H)), _const_spec((1, H)),
                _const_spec((1, H)), _const_spec((1, H)),
            ],
            out_specs=pl.BlockSpec((1, TS, H), lambda b, s: (b, s, 0)),
        ),
        compiler_params=pltpu.CompilerParams(
            dimension_semantics=("parallel", "parallel"),
            vmem_limit_bytes=VMEM_LIMIT),
    )(h1, lp['w1'], lp['bf1'], lp['w2'], lp['bf2'], lp['g2'], lp['b2'])


# ------------------- Kernel 4: head dense + classifier on [CLS] --------------
# The reference head (BertOutput) is a plain Linear with NO activation, then
# the classifier Linear is applied to the [CLS] row.
def head_classifier_kernel(x_ref, wh_ref, bh_ref, wc_ref, bc_ref, o_ref):
    x = x_ref[...].astype(jnp.bfloat16)               # (B, H) CLS rows only
    y = jnp.dot(x, wh_ref[...], preferred_element_type=jnp.float32) + bh_ref[...]
    o_ref[...] = jnp.dot(y.astype(jnp.bfloat16), wc_ref[...],
                         preferred_element_type=jnp.float32) + bc_ref[...]


def head_classifier(x_cls, wh, bh, wc, bc):
    B = x_cls.shape[0]
    Cp = wc.shape[1]                                   # lane-dense padded classes
    vmem = pl.BlockSpec(memory_space=pltpu.MemorySpace.VMEM)
    return pl.pallas_call(
        head_classifier_kernel,
        out_shape=jax.ShapeDtypeStruct((B, Cp), jnp.float32),
        in_specs=[vmem] * 5,
        out_specs=vmem,
    )(x_cls, wh, bh, wc, bc)


# ------------------------------- params --------------------------------------
def init_params(key, cfg):
    H = cfg['hidden_size']
    nh = cfg['num_heads']
    hd = H // nh
    C = cfg['num_classes']
    Cp = max(128, ((C + 127) // 128) * 128)            # lane-dense logits pad

    def nrm(k, shape, scale=0.02):
        return scale * jax.random.normal(k, shape, jnp.float32)

    keys = iter(jax.random.split(key, 5 + cfg['num_layers'] * 6))

    def split_heads_in_out(w):   # (H, H) [in, out] -> (nh, H, hd), bf16
        return jnp.transpose(w.reshape(H, nh, hd), (1, 0, 2)).astype(jnp.bfloat16)

    def split_heads_out_in(w):   # (H, H) [in, out] -> (nh, hd, H), bf16  (for Wo)
        return w.reshape(nh, hd, H).astype(jnp.bfloat16)

    params = {
        'word_table': nrm(next(keys), (cfg['vocab_size'], H)),
        'pos_table':  nrm(next(keys), (cfg['max_position_len'], H)),
        'seg_table':  nrm(next(keys), (cfg['segment_size'], H)),
        'emb_ln_g':   jnp.ones((1, H), jnp.float32),
        'emb_ln_b':   jnp.zeros((1, H), jnp.float32),
        'layers':     [],
        'head_w':     nrm(next(keys), (H, H)).astype(jnp.bfloat16),
        'head_b':     jnp.zeros((1, H), jnp.float32),
        'cls_w':      jnp.zeros((H, Cp), jnp.float32)
                         .at[:, :C].set(nrm(next(keys), (H, C)))
                         .astype(jnp.bfloat16),
        'cls_b':      jnp.zeros((1, Cp), jnp.float32),
        'num_classes': C,
    }
    for _ in range(cfg['num_layers']):
        wq = nrm(next(keys), (H, H)); wk = nrm(next(keys), (H, H))
        wv = nrm(next(keys), (H, H)); wo = nrm(next(keys), (H, H))
        w1 = nrm(next(keys), (H, 4 * H)); w2 = nrm(next(keys), (4 * H, H))
        params['layers'].append(dict(
            wq=split_heads_in_out(wq), bq=jnp.zeros((nh, 1, hd), jnp.float32),
            wk=split_heads_in_out(wk), bk=jnp.zeros((nh, 1, hd), jnp.float32),
            wv=split_heads_in_out(wv), bv=jnp.zeros((nh, 1, hd), jnp.float32),
            wo=split_heads_out_in(wo), bo=jnp.zeros((1, H), jnp.float32),
            g1=jnp.ones((1, H), jnp.float32), b1=jnp.zeros((1, H), jnp.float32),
            w1=w1.astype(jnp.bfloat16), bf1=jnp.zeros((1, 4 * H), jnp.float32),
            w2=w2.astype(jnp.bfloat16), bf2=jnp.zeros((1, H), jnp.float32),
            g2=jnp.ones((1, H), jnp.float32), b2=jnp.zeros((1, H), jnp.float32),
        ))
    return params


# ------------------------------- model ---------------------------------------
def bert_for_text_classifier(params, ids, attn_mask, cfg):
    B, S = ids.shape
    nh = cfg['num_heads']

    # Embedding gathers (XLA glue).
    word_emb = params['word_table'][ids]               # (B, S, H) f32
    pos_emb = params['pos_table'][:S]                  # (S, H)
    seg_row = params['seg_table'][0:1]                 # (1, H), segment ids = 0

    x = embed_ln(word_emb, pos_emb, seg_row,
                 params['emb_ln_g'], params['emb_ln_b'])          # bf16 stream

    # Additive attention mask kept at [B, 1, S]; broadcast in-kernel.
    mask = attn_mask.astype(jnp.float32).reshape(B, 1, S)

    for lp in params['layers']:
        h1 = attention_block(x, mask, lp, nh)          # attn + out-proj + res + LN1
        x = ffn_block(h1, lp)                          # FFN(GELU) + res + LN2

    # Only the [CLS] row enters the head/classifier kernel.
    x_cls = x[:, 0, :]
    logits_pad = head_classifier(x_cls, params['head_w'], params['head_b'],
                                 params['cls_w'], params['cls_b'])
    return logits_pad[:, :params['num_classes']]


if __name__ == "__main__":
    cfg = dict(
        vocab_size=128,
        hidden_size=32,
        max_position_len=64,
        segment_size=2,
        num_heads=4,
        num_layers=2,
        num_classes=3,
    )
    B, S = 2, 8

    key = jax.random.PRNGKey(0)
    k_param, k_ids = jax.random.split(key)

    params = init_params(k_param, cfg)
    ids = jax.random.randint(k_ids, (B, S), 0, cfg['vocab_size'], dtype=jnp.int32)
    attn_mask = jnp.zeros((B, S), jnp.float32)  # additive mask: 0 = attend everywhere

    logits = bert_for_text_classifier(params, ids, attn_mask, cfg)
    logits = jax.block_until_ready(logits)
    assert logits.shape == (B, cfg['num_classes'])
    assert bool(jnp.all(jnp.isfinite(logits)))
    print("KERNEL_OK")
</pallas_src>

<mosaic_0001>
module attributes {stable_mosaic.version = 11 : i64} {
  func.func @embed_ln_kernel(%arg0: i32, %arg1: memref<1x8x32xf32, #tpu.memory_space<vmem>>, %arg2: memref<8x32xf32, #tpu.memory_space<vmem>>, %arg3: memref<1x32xf32, #tpu.memory_space<vmem>>, %arg4: memref<1x32xf32, #tpu.memory_space<vmem>>, %arg5: memref<1x32xf32, #tpu.memory_space<vmem>>, %arg6: memref<1x8x32xbf16, #tpu.memory_space<vmem>>) attributes {dimension_semantics = [#tpu.dimension_semantics<parallel>], iteration_bounds = array<i64: 2>, scalar_prefetch = 0 : i64, scratch_operands = 0 : i64, tpu.core_type = #tpu.core_type<tc>, window_params = [{transform_indices = @transform_0, window_bounds = array<i64: 1, 8, 32>}, {pipeline_mode = #tpu.pipeline_mode<synchronous>, transform_indices = @transform_1, window_bounds = array<i64: 8, 32>}, {pipeline_mode = #tpu.pipeline_mode<synchronous>, transform_indices = @transform_2, window_bounds = array<i64: 1, 32>}, {pipeline_mode = #tpu.pipeline_mode<synchronous>, transform_indices = @transform_3, window_bounds = array<i64: 1, 32>}, {pipeline_mode = #tpu.pipeline_mode<synchronous>, transform_indices = @transform_4, window_bounds = array<i64: 1, 32>}, {transform_indices = @transform_5, window_bounds = array<i64: 1, 8, 32>}]} {
    %c0 = arith.constant 0 : index
    %c0_0 = arith.constant 0 : index
    %c0_1 = arith.constant 0 : index
    %0 = vector.load %arg1[%c0, %c0_0, %c0_1] : memref<1x8x32xf32, #tpu.memory_space<vmem>>, vector<1x8x32xf32>
    %1 = vector.shape_cast %0 : vector<1x8x32xf32> to vector<8x32xf32>
    %c0_2 = arith.constant 0 : index
    %c0_3 = arith.constant 0 : index
    %2 = vector.load %arg2[%c0_2, %c0_3] : memref<8x32xf32, #tpu.memory_space<vmem>>, vector<8x32xf32>
    %3 = arith.addf %1, %2 : vector<8x32xf32>
    %c0_4 = arith.constant 0 : index
    %c0_5 = arith.constant 0 : index
    %4 = vector.load %arg3[%c0_4, %c0_5] : memref<1x32xf32, #tpu.memory_space<vmem>>, vector<1x32xf32>
    %5 = vector.broadcast %4 : vector<1x32xf32> to vector<8x32xf32>
    %6 = arith.addf %3, %5 : vector<8x32xf32>
    %c0_6 = arith.constant 0 : index
    %c0_7 = arith.constant 0 : index
    %7 = vector.load %arg4[%c0_6, %c0_7] : memref<1x32xf32, #tpu.memory_space<vmem>>, vector<1x32xf32>
    %c0_8 = arith.constant 0 : index
    %c0_9 = arith.constant 0 : index
    %8 = vector.load %arg5[%c0_8, %c0_9] : memref<1x32xf32, #tpu.memory_space<vmem>>, vector<1x32xf32>
    %cst = arith.constant dense<0.000000e+00> : vector<8xf32>
    %9 = vector.multi_reduction <add>, %6, %cst [1] : vector<8x32xf32> to vector<8xf32>
    %10 = vector.shape_cast %9 : vector<8xf32> to vector<8x1xf32>
    %cst_10 = arith.constant 3.200000e+01 : f32
    %11 = vector.broadcast %cst_10 : f32 to vector<8x1xf32>
    %12 = arith.divf %10, %11 : vector<8x1xf32>
    %13 = vector.broadcast %12 : vector<8x1xf32> to vector<8x32xf32>
    %14 = arith.subf %6, %13 : vector<8x32xf32>
    %15 = arith.mulf %14, %14 : vector<8x32xf32>
    %cst_11 = arith.constant dense<0.000000e+00> : vector<8xf32>
    %16 = vector.multi_reduction <add>, %15, %cst_11 [1] : vector<8x32xf32> to vector<8xf32>
    %17 = vector.shape_cast %16 : vector<8xf32> to vector<8x1xf32>
    %cst_12 = arith.constant 3.200000e+01 : f32
    %18 = vector.broadcast %cst_12 : f32 to vector<8x1xf32>
    %19 = arith.divf %17, %18 : vector<8x1xf32>
    %cst_13 = arith.constant 9.99999974E-6 : f32
    %20 = vector.broadcast %cst_13 : f32 to vector<8x1xf32>
    %21 = arith.addf %19, %20 : vector<8x1xf32>
    %22 = math.rsqrt %21 : vector<8x1xf32>
    %23 = vector.broadcast %12 : vector<8x1xf32> to vector<8x32xf32>
    %24 = arith.subf %6, %23 : vector<8x32xf32>
    %25 = vector.broadcast %22 : vector<8x1xf32> to vector<8x32xf32>
    %26 = arith.mulf %24, %25 : vector<8x32xf32>
    %27 = vector.broadcast %7 : vector<1x32xf32> to vector<8x32xf32>
    %28 = arith.mulf %26, %27 : vector<8x32xf32>
    %29 = vector.broadcast %8 : vector<1x32xf32> to vector<8x32xf32>
    %30 = arith.addf %28, %29 : vector<8x32xf32>
    %31 = arith.truncf %30 : vector<8x32xf32> to vector<8x32xbf16>
    %32 = vector.shape_cast %31 : vector<8x32xbf16> to vector<1x8x32xbf16>
    %c0_14 = arith.constant 0 : index
    %c0_15 = arith.constant 0 : index
    %c0_16 = arith.constant 0 : index
    %33 = vector.load %arg6[%c0_14, %c0_15, %c0_16] : memref<1x8x32xbf16, #tpu.memory_space<vmem>>, vector<1x8x32xbf16>
    tpu.vector_store %arg6[%c0_14, %c0_15, %c0_16], %32 {strides = array<i32>} : memref<1x8x32xbf16, #tpu.memory_space<vmem>>, vector<1x8x32xbf16>,
    return
  }
  func.func @transform_0(%arg0: i32) -> (i32, i32, i32) {
    %c0_i32 = arith.constant 0 : i32
    %c0_i32_0 = arith.constant 0 : i32
    %c0_i32_1 = arith.constant 0 : i32
    return %arg0, %c0_i32, %c0_i32_0 : i32, i32, i32
  }
  func.func @transform_1(%arg0: i32) -> (i32, i32) {
    %c0_i32 = arith.constant 0 : i32
    %c0_i32_0 = arith.constant 0 : i32
    %c0_i32_1 = arith.constant 0 : i32
    return %c0_i32, %c0_i32_0 : i32, i32
  }
  func.func @transform_2(%arg0: i32) -> (i32, i32) {
    %c0_i32 = arith.constant 0 : i32
    %c0_i32_0 = arith.constant 0 : i32
    %c0_i32_1 = arith.constant 0 : i32
    return %c0_i32, %c0_i32_0 : i32, i32
  }
  func.func @transform_3(%arg0: i32) -> (i32, i32) {
    %c0_i32 = arith.constant 0 : i32
    %c0_i32_0 = arith.constant 0 : i32
    %c0_i32_1 = arith.constant 0 : i32
    return %c0_i32, %c0_i32_0 : i32, i32
  }
  func.func @transform_4(%arg0: i32) -> (i32, i32) {
    %c0_i32 = arith.constant 0 : i32
    %c0_i32_0 = arith.constant 0 : i32
    %c0_i32_1 = arith.constant 0 : i32
    return %c0_i32, %c0_i32_0 : i32, i32
  }
  func.func @transform_5(%arg0: i32) -> (i32, i32, i32) {
    %c0_i32 = arith.constant 0 : i32
    %c0_i32_0 = arith.constant 0 : i32
    %c0_i32_1 = arith.constant 0 : i32
    return %arg0, %c0_i32, %c0_i32_0 : i32, i32, i32
  }
}

</mosaic_0001>

<llo_original>
// kernel: tpu_custom_call.1
$region0: #{tpu_custom_call.1}
  #allocation0 [shape = 'u32[]', space=smem, size = 0x4, offset = 0x4, fixed_abs, tag = 'smem constant byte address 0x4 - core index']
  #allocation1 [shape = 'u32[144,128]{1,0:T(1,128)}', space=vmem, size = 0x12000, scoped, tag = 'internal scratch']
  %s0 = inlined_call_operand.hbm [shape: f32[2,8,32], index: 0, kind: input, shape index: {}]
  %s1 = inlined_call_operand.hbm [shape: f32[8,32], index: 1, kind: input, shape index: {}]
  %s2 = inlined_call_operand.vmem [shape: f32[1,32], index: 2, kind: input, shape index: {}]
  %s3 = inlined_call_operand.vmem [shape: f32[1,32], index: 3, kind: input, shape index: {}]
  %s4 = inlined_call_operand.vmem [shape: f32[1,32], index: 4, kind: input, shape index: {}]
  %s5 = inlined_call_operand.hbm [shape: bf16[2,8,32], index: 5, kind: output, shape index: {}]
  %s6 = sld [smem:[#allocation0]]
  $region61: #{tpu_custom_call.1} parent=0
    _
  %s8 = ssub.s32 1, %s6
  %s9 = scalar_select 0, %s8, %s6
  $region1: #{tpu_custom_call.1} parent=0
    #allocation2 [shape = 'u8[8192]{0}', space=vmem, size = 0x2000, scoped, tag = 'input window, operand 0']
    #allocation3 [shape = 's32[2]{0}', space=sflag, size = 0x8, scoped, tag = 'scoped memory for tpu_custom_call.1']
    #allocation4 [shape = 's32[2]{0}', space=sflag, size = 0x8, scoped, tag = 'scoped memory for tpu_custom_call.1']
    #allocation5 [shape = 'u8[4096]{0}', space=vmem, size = 0x1000, scoped, tag = 'input window, operand 1, single buffered']
    #allocation6 [shape = 's32[1]{0}', space=sflag, size = 0x4, scoped, tag = 'scoped memory for tpu_custom_call.1']
    #allocation7 [shape = 'u8[4096]{0}', space=vmem, size = 0x1000, scoped, tag = 'output window, operand 0']
    %10 = vsyncpa [#allocation3], 0
    %s11 = scalar_lea.sflag [#allocation3], 1
    %12 = vsyncpa %s11, 0
    %13 = vsyncpa [#allocation6], 0
    %14 = vsyncpa [#allocation4], 0
    %s15 = scalar_lea.sflag [#allocation4], 1
    %16 = vsyncpa %s15, 0
    loop: start=0, step=1, limit=4
    $region2: #{tpu_custom_call.1} parent=1 // loop_pre_header
      _
    $region3: #{tpu_custom_call.1} parent=1 // loop_header
      %s18 = sphi 0, %s22
      %p19 = scmp.ge.s32.totalorder %s18, 4
      %s28 = sphi 0, %s30
      %s31 = sphi 0, %s28
      %s32 = sphi 0, %s31
      %s48 = sphi 0, %s32
      %s52 = sphi 0, %s52
      %s54 = sphi 0, %s52
      %s55 = sphi 0, %s54
      %s69 = sphi 0, %s55
      %s73 = sphi 0, %s73
      %s75 = sphi 0, %s73
      %s76 = sphi 0, %s75
      %s90 = sphi 0, %s76
      %s94 = sphi 0, %s94
      %s96 = sphi 0, %s94
      %s97 = sphi 0, %s96
      %s111 = sphi 0, %s97
      %s115 = sphi 0, %s115
      %s117 = sphi 0, %s115
      %s118 = sphi 0, %s117
      %s132 = sphi 0, %s118
      %s138 = sphi 0, %s140
      %s141 = sphi 0, %s138
      %s142 = sphi 0, %s141
      %s158 = sphi 0, %s142
    $region4: #{tpu_custom_call.1} parent=1 // loop_header_branch
      %21 = sbr.rel (%p19) target = $region8
    $region5: #{tpu_custom_call.1} parent=1 // loop_body
      %s23 = ssub.s32 %s18, 1
      %s24 = ssub.s32 %s18, 2
      %s25 = sadd.s32 %s18, 1
      %s26 = ssub.s32 %s18, %s25
      %p27 = scmp.eq.s32.totalorder %s26, 0
      %s29 = sadd.s32 %s28, 1
      %s30 = scalar_select %p27, %s28, %s29
      %p33 = pneg %p27
      %p34 = scmp.eq.s32.totalorder %s18, 1
      %p35 = por %p33, %p34
      %p36 = scmp.ne.s32.totalorder %s28, %s31
      %p37 = scmp.eq.s32.totalorder %s18, 0
      %p38 = por %p36, %p37
      %p39 = scmp.ne.s32.totalorder %s28, %s31
      %p40 = scmp.eq.s32.totalorder %s23, 1
      %p41 = por %p39, %p40
      %p42 = scmp.ne.s32.totalorder %s31, %s32
      %p43 = scmp.eq.s32.totalorder %s23, 0
      %p44 = por %p42, %p43
      %p45 = scmp.ne.s32.totalorder %s31, %s32
      %p46 = scmp.eq.s32.totalorder %s24, 1
      %p47 = por %p45, %p46
      %p49 = scmp.ne.s32.totalorder %s32, %s48
      %p50 = scmp.eq.s32.totalorder %s24, 0
      %p51 = por %p49, %p50
      %s53 = sadd.s32 %s52, 1
      %p56 = scmp.eq.s32.totalorder %s18, 1
      %p57 = scmp.ne.s32.totalorder %s52, %s54
      %p58 = scmp.eq.s32.totalorder %s18, 0
      %p59 = por %p57, %p58
      %p60 = scmp.ne.s32.totalorder %s52, %s54
      %p61 = scmp.eq.s32.totalorder %s23, 1
      %p62 = por %p60, %p61
      %p63 = scmp.ne.s32.totalorder %s54, %s55
      %p64 = scmp.eq.s32.totalorder %s23, 0
      %p65 = por %p63, %p64
      %p66 = scmp.ne.s32.totalorder %s54, %s55
      %p67 = scmp.eq.s32.totalorder %s24, 1
      %p68 = por %p66, %p67
      %p70 = scmp.ne.s32.totalorder %s55, %s69
      %p71 = scmp.eq.s32.totalorder %s24, 0
      %p72 = por %p70, %p71
      %s74 = sadd.s32 %s73, 1
      %p77 = scmp.eq.s32.totalorder %s18, 1
      %p78 = scmp.ne.s32.totalorder %s73, %s75
      %p79 = scmp.eq.s32.totalorder %s18, 0
      %p80 = por %p78, %p79
      %p81 = scmp.ne.s32.totalorder %s73, %s75
      %p82 = scmp.eq.s32.totalorder %s23, 1
      %p83 = por %p81, %p82
      %p84 = scmp.ne.s32.totalorder %s75, %s76
      %p85 = scmp.eq.s32.totalorder %s23, 0
      %p86 = por %p84, %p85
      %p87 = scmp.ne.s32.totalorder %s75, %s76
      %p88 = scmp.eq.s32.totalorder %s24, 1
      %p89 = por %p87, %p88
      %p91 = scmp.ne.s32.totalorder %s76, %s90
      %p92 = scmp.eq.s32.totalorder %s24, 0
      %p93 = por %p91, %p92
      %s95 = sadd.s32 %s94, 1
      %p98 = scmp.eq.s32.totalorder %s18, 1
      %p99 = scmp.ne.s32.totalorder %s94, %s96
      %p100 = scmp.eq.s32.totalorder %s18, 0
      %p101 = por %p99, %p100
      %p102 = scmp.ne.s32.totalorder %s94, %s96
      %p103 = scmp.eq.s32.totalorder %s23, 1
      %p104 = por %p102, %p103
      %p105 = scmp.ne.s32.totalorder %s96, %s97
      %p106 = scmp.eq.s32.totalorder %s23, 0
      %p107 = por %p105, %p106
      %p108 = scmp.ne.s32.totalorder %s96, %s97
      %p109 = scmp.eq.s32.totalorder %s24, 1
      %p110 = por %p108, %p109
      %p112 = scmp.ne.s32.totalorder %s97, %s111
      %p113 = scmp.eq.s32.totalorder %s24, 0
      %p114 = por %p112, %p113
      %s116 = sadd.s32 %s115, 1
      %p119 = scmp.eq.s32.totalorder %s18, 1
      %p120 = scmp.ne.s32.totalorder %s115, %s117
      %p121 = scmp.eq.s32.totalorder %s18, 0
      %p122 = por %p120, %p121
      %p123 = scmp.ne.s32.totalorder %s115, %s117
      %p124 = scmp.eq.s32.totalorder %s23, 1
      %p125 = por %p123, %p124
      %p126 = scmp.ne.s32.totalorder %s117, %s118
      %p127 = scmp.eq.s32.totalorder %s23, 0
      %p128 = por %p126, %p127
      %p129 = scmp.ne.s32.totalorder %s117, %s118
      %p130 = scmp.eq.s32.totalorder %s24, 1
      %p131 = por %p129, %p130
      %p133 = scmp.ne.s32.totalorder %s118, %s132
      %p134 = scmp.eq.s32.totalorder %s24, 0
      %p135 = por %p133, %p134
      %s136 = ssub.s32 %s18, %s25
      %p137 = scmp.eq.s32.totalorder %s136, 0
      %s139 = sadd.s32 %s138, 1
      %s140 = scalar_select %p137, %s138, %s139
      %p143 = pneg %p137
      %p144 = scmp.eq.s32.totalorder %s18, 1
      %p145 = por %p143, %p144
      %p146 = scmp.ne.s32.totalorder %s138, %s141
      %p147 = scmp.eq.s32.totalorder %s18, 0
      %p148 = por %p146, %p147
      %p149 = scmp.ne.s32.totalorder %s138, %s141
      %p150 = scmp.eq.s32.totalorder %s23, 1
      %p151 = por %p149, %p150
      %p152 = scmp.ne.s32.totalorder %s141, %s142
      %p153 = scmp.eq.s32.totalorder %s23, 0
      %p154 = por %p152, %p153
      %p155 = scmp.ne.s32.totalorder %s141, %s142
      %p156 = scmp.eq.s32.totalorder %s24, 1
      %p157 = por %p155, %p156
      %p159 = scmp.ne.s32.totalorder %s142, %s158
      %p160 = scmp.eq.s32.totalorder %s24, 0
      %p161 = por %p159, %p160
      %p162 = scmp.le.s32.totalorder 1, %s18
      %p163 = scmp.lt.s32.totalorder %s18, 3
      %p164 = pnand %p162, %p163
      %p165 = pneg %p164
      // Predicated region
      $region9: #{tpu_custom_call.1} parent=5 // pred_check
        _
      $region10: #{tpu_custom_call.1} parent=5 // pred_check_branch
        %167 = sbr.rel (%p164) target = $region12
      $region11: #{tpu_custom_call.1} parent=5 // pred_region
        %s168 = ssub.s32 %s18, 1
        // Predicated region
        $region13: #{tpu_custom_call.1} parent=11 // pred_check
          %p169 = pneg %p65
        $region14: #{tpu_custom_call.1} parent=11 // pred_check_branch
          %171 = sbr.rel (%p169) target = $region16
        $region15: #{tpu_custom_call.1} parent=11 // pred_region
          %s173 = ssub.s32 128, 128
          %174 = vsyncadd [#allocation6], %s173
          %s176 = sshll.u32 [#allocation5], 4
          %s177 = int_to_ptr.vmem [resolvable:$true] %s176
          %179 = dma.hbm_to_vmem [thread:$0]  %s1, 128, %s177, [#allocation6]
        $region16: #{tpu_custom_call.1} parent=11 // pred_fallthru
          _
        // Predicated region
        $region17: #{tpu_custom_call.1} parent=11 // pred_check
          %p180 = pneg %p86
        $region18: #{tpu_custom_call.1} parent=11 // pred_check_branch
          %182 = sbr.rel (%p180) target = $region20
        $region19: #{tpu_custom_call.1} parent=11 // pred_region
          _
        $region20: #{tpu_custom_call.1} parent=11 // pred_fallthru
          _
        // Predicated region
        $region21: #{tpu_custom_call.1} parent=11 // pred_check
          %p183 = pneg %p107
        $region22: #{tpu_custom_call.1} parent=11 // pred_check_branch
          %185 = sbr.rel (%p183) target = $region24
        $region23: #{tpu_custom_call.1} parent=11 // pred_region
          _
        $region24: #{tpu_custom_call.1} parent=11 // pred_fallthru
          _
        // Predicated region
        $region25: #{tpu_custom_call.1} parent=11 // pred_check
          %p186 = pneg %p128
        $region26: #{tpu_custom_call.1} parent=11 // pred_check_branch
          %188 = sbr.rel (%p186) target = $region28
        $region27: #{tpu_custom_call.1} parent=11 // pred_region
          _
        $region28: #{tpu_custom_call.1} parent=11 // pred_fallthru
          _
      $region12: #{tpu_custom_call.1} parent=5 // pred_fallthru
        _
      %p189 = scmp.lt.s32.totalorder %s18, 2
      // Predicated region
      $region29: #{tpu_custom_call.1} parent=5 // pred_check
        %p190 = pneg %p189
      $region30: #{tpu_custom_call.1} parent=5 // pred_check_branch
        %192 = sbr.rel (%p190) target = $region32
      $region31: #{tpu_custom_call.1} parent=5 // pred_region
        // Predicated region
        $region33: #{tpu_custom_call.1} parent=31 // pred_check
          %p193 = pneg %p38
        $region34: #{tpu_custom_call.1} parent=31 // pred_check_branch
          %195 = sbr.rel (%p193) target = $region36
        $region35: #{tpu_custom_call.1} parent=31 // pred_region
          %s196 = sand.u32 %s28, 1
          %s197 = scalar_lea.sflag [#allocation3], %s196
          %s198 = sand.u32 %s28, 1
          %s199 = smul.addr %s198, 8
          %s200 = scalar_lea.vmem [#allocation2], %s199
          %s202 = ssub.s32 128, 128
          %203 = vsyncadd %s197, %s202
          %s204 = smul.addr %s18, 128
          %s205 = scalar_lea.hbm %s0, %s204
          %s207 = sshll.u32 %s200, 4
          %s208 = int_to_ptr.vmem [resolvable:$true] %s207
          %210 = dma.hbm_to_vmem [thread:$0]  %s205, 128, %s208, %s197
        $region36: #{tpu_custom_call.1} parent=31 // pred_fallthru
          _
      $region32: #{tpu_custom_call.1} parent=5 // pred_fallthru
        _
      %p211 = scmp.le.s32.totalorder 1, %s18
      %p212 = scmp.lt.s32.totalorder %s18, 3
      %p213 = pnand %p211, %p212
      %p214 = pneg %p213
      // Predicated region
      $region37: #{tpu_custom_call.1} parent=5 // pred_check
        _
      $region38: #{tpu_custom_call.1} parent=5 // pred_check_branch
        %216 = sbr.rel (%p213) target = $region40
      $region39: #{tpu_custom_call.1} parent=5 // pred_region
        %s217 = ssub.s32 %s18, 1
        %s218 = sand.u32 %s31, 1
        %s219 = scalar_lea.sflag [#allocation3], %s218
        %s220 = sand.u32 %s31, 1
        %s221 = smul.addr %s220, 8
        %s222 = scalar_lea.vmem [#allocation2], %s221
        // Predicated region
        $region41: #{tpu_custom_call.1} parent=39 // pred_check
          %p223 = pneg %p44
        $region42: #{tpu_custom_call.1} parent=39 // pred_check_branch
          %225 = sbr.rel (%p223) target = $region44
        $region43: #{tpu_custom_call.1} parent=39 // pred_region
          %226 = dma.done %s219, 128
        $region44: #{tpu_custom_call.1} parent=39 // pred_fallthru
          _
        // Predicated region
        $region45: #{tpu_custom_call.1} parent=39 // pred_check
          %p227 = pneg %p65
        $region46: #{tpu_custom_call.1} parent=39 // pred_check_branch
          %229 = sbr.rel (%p227) target = $region48
        $region47: #{tpu_custom_call.1} parent=39 // pred_region
          %230 = dma.done [#allocation6], 128
        $region48: #{tpu_custom_call.1} parent=39 // pred_fallthru
          _
        %s231 = sand.u32 %s31, 1
        %s232 = scalar_lea.sflag [#allocation3], %s231
        %s233 = sand.u32 %s31, 1
        %s234 = smul.addr %s233, 8
        %s235 = scalar_lea.vmem [#allocation2], %s234
        %p236 = pneg %p44
        %p237 = pneg %p41
        %p238 = pneg %p65
        %p239 = pneg %p62
        %p240 = pneg %p86
        %p241 = pneg %p83
        %p242 = pneg %p107
        %p243 = pneg %p104
        %p244 = pneg %p128
        %p245 = pneg %p125
        %p246 = pneg %p154
        %p247 = pneg %p151
        %s248 = sand.u32 %s141, 1
        %s249 = scalar_lea.sflag [#allocation4], %s248
        %s250 = sand.u32 %s141, 1
        %s251 = smul.addr %s250, 4
        %s252 = scalar_lea.vmem [#allocation7], %s251
        %v253 = vld [vmem:[%s222] sm:$0xff]
        %v254 = vld [vmem:[#allocation5] sm:$0xff]
        %v255 = vadd.f32 %v253, %v254
        %v256 = vld [vmem:[%s2] sm:$0x1]
        %v258 = vlaneseq
        %v259 = vshrl.u32 %v258, 7
        %v260 = vsub.s32 0, %v259
        %v261 = vrot.slane %v256, %v260
        %v263 = vadd.f32 %v255, %v261
        %v264 = vld [vmem:[%s3] sm:$0x1]
        %v265 = vld [vmem:[%s4] sm:$0x1]
        %vm266 = vcmask 261120
        %v267 = vsel %vm266, %v263, 0.0
        %268 = vadd.xlane.f32.xlu0 %v267
        %v269 = vpop.xlane.xlu0 %268
        %v270 = vrcp.pop 32.0
        %v271 = vmul.f32 %v269, %v270
        %v272 = vsub.f32 %v263, %v271
        %v273 = vmul.f32 %v272, %v272
        %v274 = vsel %vm266, %v273, 0.0
        %275 = vadd.xlane.f32.xlu0 %v274
        %v276 = vpop.xlane.xlu0 %275
        %v277 = vmul.f32 %v276, %v270
        %v278 = vadd.f32 %v277, 1e-05
        %v279 = vrsqrt.pop %v278
        %v280 = vmul.f32 %v272, %v279
        %v282 = vlaneseq
        %v283 = vshrl.u32 %v282, 7
        %v284 = vsub.s32 0, %v283
        %v285 = vrot.slane %v264, %v284
        %v287 = vmul.f32 %v280, %v285
        %v289 = vlaneseq
        %v290 = vshrl.u32 %v289, 7
        %v291 = vsub.s32 0, %v290
        %v292 = vrot.slane %v265, %v291
        %v294 = vadd.f32 %v287, %v292
        %v295 = vpack.c.bf16 %v294, %v294
        %vm296 = vcmask 257024
        %297 = vst.msk [vmem:[%s252] sm:$0xf] %vm296, %v295
        %s298 = sand.u32 %s141, 1
        %s299 = scalar_lea.sflag [#allocation4], %s298
        %s300 = sand.u32 %s141, 1
        %s301 = smul.addr %s300, 4
        %s302 = scalar_lea.vmem [#allocation7], %s301
        // Predicated region
        $region49: #{tpu_custom_call.1} parent=39 // pred_check
          %p303 = pneg %p151
        $region50: #{tpu_custom_call.1} parent=39 // pred_check_branch
          %305 = sbr.rel (%p303) target = $region52
        $region51: #{tpu_custom_call.1} parent=39 // pred_region
          %s307 = ssub.s32 64, 64
          %308 = vsyncadd %s299, %s307
          %s309 = smul.addr %s23, 64
          %s310 = scalar_lea.hbm %s5, %s309
          %s312 = sshll.u32 %s302, 4
          %s313 = int_to_ptr.vmem [resolvable:$true] %s312
          %315 = dma.vmem_to_hbm [thread:$0]  %s313, 64, %s310, %s299
        $region52: #{tpu_custom_call.1} parent=39 // pred_fallthru
          _
      $region40: #{tpu_custom_call.1} parent=5 // pred_fallthru
        _
      %p316 = scmp.le.s32.totalorder 2, %s18
      // Predicated region
      $region53: #{tpu_custom_call.1} parent=5 // pred_check
        %p317 = pneg %p316
      $region54: #{tpu_custom_call.1} parent=5 // pred_check_branch
        %319 = sbr.rel (%p317) target = $region56
      $region55: #{tpu_custom_call.1} parent=5 // pred_region
        %s320 = ssub.s32 %s18, 2
        // Predicated region
        $region57: #{tpu_custom_call.1} parent=55 // pred_check
          %p321 = pneg %p157
        $region58: #{tpu_custom_call.1} parent=55 // pred_check_branch
          %323 = sbr.rel (%p321) target = $region60
        $region59: #{tpu_custom_call.1} parent=55 // pred_region
          %s324 = sand.u32 %s142, 1
          %s325 = scalar_lea.sflag [#allocation4], %s324
          %s326 = sand.u32 %s142, 1
          %s327 = smul.addr %s326, 4
          %s328 = scalar_lea.vmem [#allocation7], %s327
          %329 = dma.done %s325, 64
        $region60: #{tpu_custom_call.1} parent=55 // pred_fallthru
          _
      $region56: #{tpu_custom_call.1} parent=5 // pred_fallthru
        _
    $region6: #{tpu_custom_call.1} parent=1 // loop_footer
      %s22 = sadd.s32 1, %s18
    $region7: #{tpu_custom_call.1} parent=1 // loop_footer_branch
      %17 = sbr.rel target = $region3
    $region8: #{tpu_custom_call.1} parent=1 // loop_exit
      _
    %330 = vsyncpa [#allocation3], 1
    %s331 = scalar_lea.sflag [#allocation3], 1
    %332 = vsyncpa %s331, 1
    %333 = vsyncpa [#allocation6], 1
    %334 = vsyncpa [#allocation4], 1
    %s335 = scalar_lea.sflag [#allocation4], 1
    %336 = vsyncpa %s335, 1

</llo_original>
